<compile_context>
chip_gen: v6e
topology: v6e:2x2x1
jax: 0.10.0
libtpu: 0.0.40
codegen_flags: <defaults>
</compile_context>

<pallas_src>
import functools

import jax
import jax.numpy as jnp
from jax.experimental import pallas as pl
from jax.experimental.pallas import tpu as pltpu


_LANE_TILE_CAP = 4096            # max feature (lane) elements per reduction step
_SUBLANE = {4: 8, 2: 16, 1: 32}  # itemsize -> sublane multiple for (sublane,128) tiling


def _round_up(n, m):
    return -(-n // m) * m


def _vmem_policy():
    """Per-generation VMEM policy: (input-tile budget, scoped-limit cap, physical bytes).

    v5e/v6e have 128 MiB VMEM per TensorCore -> larger tiles amortize the
    ~0.35 us/step pipeline overhead.  v7x has only 64 MiB per TC -> hard-cap the
    scoped limit well below that so double-buffered inputs + padded scratch fit.
    """
    phys = 64 << 20  # conservative default == v7x per-TC capacity
    try:
        info = pltpu.get_tpu_info()
        phys = int(getattr(info, "vmem_capacity_bytes", phys))
    except Exception:
        pass
    if phys >= (96 << 20):                 # v5e / v6e (128 MiB physical)
        return (48 << 20), (80 << 20), phys
    return (24 << 20), (44 << 20), phys    # v7x-class (64 MiB physical)


def _lane_fold(prod, acc_w):
    """Fold (block_b, block_d) -> (block_b, acc_w) with pure VPU adds.

    128-aligned static lane slices select whole vregs (no re-layout, no XLU
    work); a balanced tree keeps the add dependency chain short.
    """
    block_d = prod.shape[-1]
    if block_d == acc_w:
        return prod
    chunks = [prod[:, j * acc_w:(j + 1) * acc_w] for j in range(block_d // acc_w)]
    while len(chunks) > 1:
        nxt = [chunks[i] + chunks[i + 1] for i in range(0, len(chunks) - 1, 2)]
        if len(chunks) % 2:
            nxt.append(chunks[-1])
        chunks = nxt
    return chunks[0]


def _similarity_kernel(x_ref, y_ref, o_ref, dot_acc, xx_acc, yy_acc, *, inv_temp, eps):
    k = pl.program_id(1)
    acc_w = dot_acc.shape[-1]

    @pl.when(k == 0)
    def _init():
        dot_acc[...] = jnp.zeros_like(dot_acc)
        xx_acc[...] = jnp.zeros_like(xx_acc)
        yy_acc[...] = jnp.zeros_like(yy_acc)

    # Cast the inputs to f32 once (2 casts instead of 3 per tile); products and
    # accumulation run in full precision for bf16/int8 inputs, matching the
    # reference, and avoiding per-multiply converts on v5e (no bf16 VALU).
    x = x_ref[...].astype(jnp.float32)
    y = y_ref[...].astype(jnp.float32)

    # Lane-dense accumulation: no cross-lane (XLU) reduction and no masked
    # (block_b, 1) vreg read-modify-writes in the hot loop -- full-width VPU adds.
    xx_acc[...] += _lane_fold(x * x, acc_w)
    yy_acc[...] += _lane_fold(y * y, acc_w)
    dot_acc[...] += _lane_fold(x * y, acc_w)

    @pl.when(k == pl.num_programs(1) - 1)
    def _finalize():
        # Single cross-lane reduction per accumulator, only at finalize.
        dot = jnp.sum(dot_acc[...], axis=-1, keepdims=True)
        xx = jnp.sum(xx_acc[...], axis=-1, keepdims=True)
        yy = jnp.sum(yy_acc[...], axis=-1, keepdims=True)
        # PyTorch cosine_similarity clamps the *product* of the squared norms:
        #   cos = x.y * rsqrt(max(||x||^2 * ||y||^2, eps^2));  rsqrt -> EUP slot.
        inv = jax.lax.rsqrt(jnp.maximum(xx * yy, eps * eps))
        o_ref[...] = (dot * inv * inv_temp).astype(o_ref.dtype)


def _choose_block_d(D):
    """Feature (reduction) tile: multiple of 128 dividing D, or the full dim."""
    if D % 128 != 0 or D <= _LANE_TILE_CAP:
        return D
    best = 128
    for d in range(128, _LANE_TILE_CAP + 1, 128):
        if D % d == 0:
            best = d
    return best


def _choose_block_b(B, block_d, itemsize, sub, tile_budget):
    """Batch tile: largest divisor of B (multiple of the dtype sublane quantum)
    that fits the VMEM budget, preferring an even number (>=2) of batch grid
    steps so both v7x TensorCores get work on the 'parallel' axis."""
    # Per-row VMEM: 2 inputs x 2 pipeline buffers + 3 lane-padded f32
    # accumulators + double-buffered lane-padded output block.
    per_row = 4 * block_d * itemsize + (3 + 2) * 128 * 4
    max_rows = max(sub, tile_budget // per_row)
    if B % sub != 0:
        return B  # tiny unaligned B: full-dim block (wrapper pads larger cases)
    divs = [d for d in range(sub, B + 1, sub) if B % d == 0]
    fits = [d for d in divs if d <= max_rows] or [divs[0]]
    even_steps = [d for d in fits if B // d >= 2 and (B // d) % 2 == 0]
    if even_steps:
        return max(even_steps)
    multi_steps = [d for d in fits if B // d >= 2]
    if multi_steps:
        return max(multi_steps)
    return max(fits)


def similarity(x, y, temp, *, eps=1e-8, block_b=None, block_d=None):
    """Pallas equivalent of Similarity(temp)(x, y) for 2-D inputs (B, D)."""
    assert x.shape == y.shape and x.ndim == 2, "expected x, y of shape (B, D)"
    B, D = x.shape
    itemsize = jnp.dtype(x.dtype).itemsize
    sub = _SUBLANE.get(itemsize, 8)
    tile_budget, vmem_cap, vmem_phys = _vmem_policy()

    # Zero-pad awkward shapes so the (sublane, 128)-tiled path always applies:
    # zero rows/columns change neither x.y nor the norms; padded rows are sliced
    # off below.  D is only padded when a single full-width tile would be huge.
    Bp, Dp = B, D
    if block_b is None and B % sub != 0:
        Bp = _round_up(B, sub)
    if block_d is None and D % 128 != 0 and D > _LANE_TILE_CAP:
        Dp = _round_up(D, 128)
    if (Bp, Dp) != (B, D):
        x = jnp.pad(x, ((0, Bp - B), (0, Dp - D)))
        y = jnp.pad(y, ((0, Bp - B), (0, Dp - D)))

    if block_d is None:
        block_d = _choose_block_d(Dp)
    assert Dp % block_d == 0 and (block_d % 128 == 0 or block_d == Dp)
    if block_b is None:
        block_b = _choose_block_b(Bp, block_d, itemsize, sub, tile_budget)
    assert Bp % block_b == 0 and (block_b % sub == 0 or block_b == Bp)

    # Lane-dense accumulator width: 128 when the reduction tile splits into
    # 128-lane chunks, otherwise the (full-dim) tile width.
    acc_w = 128 if block_d % 128 == 0 else block_d

    grid = (Bp // block_b, Dp // block_d)
    n_steps = grid[0] * grid[1]
    in_tile_bytes = block_b * block_d * itemsize

    # v7x only: with tiny tiles the 3.2 TB/s HBM makes per-step transfers so
    # short that DMA-issue latency is exposed with 2 buffers; buffer 3-deep.
    use_deep_buffers = (
        vmem_phys < (96 << 20)
        and in_tile_bytes < (1 << 20)
        and n_steps > 4
        and hasattr(pl, "Buffered")
    )
    n_buf = 3 if use_deep_buffers else 2

    # VMEM accounting with lane-padded scratch/output (instead of a flat fudge).
    scratch_bytes = 3 * block_b * _round_up(acc_w, 128) * 4
    out_bytes = 2 * block_b * 128 * 4
    in_bytes = 2 * n_buf * in_tile_bytes
    needed = in_bytes + scratch_bytes + out_bytes
    if needed > vmem_cap:
        raise ValueError(
            f"block_b={block_b}, block_d={block_d} needs ~{needed >> 20} MiB VMEM, "
            f"over this generation's {vmem_cap >> 20} MiB cap; pick smaller blocks."
        )
    vmem_limit = min(vmem_cap, max(int(needed * 1.25) + (2 << 20), 24 << 20))

    def _in_spec():
        index_map = lambda i, k: (i, k)
        if use_deep_buffers:
            try:
                return pl.BlockSpec(
                    (block_b, block_d), index_map, pipeline_mode=pl.Buffered(n_buf)
                )
            except TypeError:  # older jax: fall back to default double-buffering
                pass
        return pl.BlockSpec((block_b, block_d), index_map)

    kernel = functools.partial(
        _similarity_kernel, inv_temp=float(1.0 / temp), eps=float(eps)
    )

    out2d = pl.pallas_call(
        kernel,
        out_shape=jax.ShapeDtypeStruct((Bp, 1), jnp.float32),
        grid_spec=pltpu.PrefetchScalarGridSpec(
            num_scalar_prefetch=0,
            grid=grid,
            in_specs=[_in_spec(), _in_spec()],
            # (block_b, 1) output is lane-sparse but written once per batch tile;
            # if this ever feeds further Pallas compute, fuse downstream instead.
            out_specs=pl.BlockSpec((block_b, 1), lambda i, k: (i, 0)),
            scratch_shapes=[
                pltpu.VMEM((block_b, acc_w), jnp.float32) for _ in range(3)
            ],
        ),
        compiler_params=pltpu.CompilerParams(
            dimension_semantics=("parallel", "arbitrary"),
            vmem_limit_bytes=vmem_limit,
        ),
    )(x, y)
    return out2d[:B, 0]  # (B,)


def similarity_ref(x, y, temp, eps=1e-8):
    """Pure-JAX reference matching torch.nn.CosineSimilarity(dim=1)(x, y) / temp
    (PyTorch clamps the product of the norms: sqrt(max(||x||^2*||y||^2, eps^2)))."""
    x = x.astype(jnp.float32)
    y = y.astype(jnp.float32)
    dot = jnp.sum(x * y, axis=1)
    xx = jnp.sum(x * x, axis=1)
    yy = jnp.sum(y * y, axis=1)
    return dot / jnp.sqrt(jnp.maximum(xx * yy, eps * eps)) / temp


if __name__ == "__main__":
    temp = 0.05  # typical SimCSE temperature

    # Small demo shape consistent with the module: batch=8, hidden=32.
    key = jax.random.PRNGKey(0)
    kx, ky = jax.random.split(key)
    x = jax.random.normal(kx, (8, 32), dtype=jnp.float32)
    y = jax.random.normal(ky, (8, 32), dtype=jnp.float32)
    out = jax.block_until_ready(similarity(x, y, temp))
    ref = similarity_ref(x, y, temp)
    assert out.shape == (8,)
    assert jnp.allclose(out, ref, atol=1e-5, rtol=1e-5), (out, ref)

    # Multi-tile path: batch tiles + multi-step D reduction + multi-chunk lane fold.
    k1, k2 = jax.random.split(jax.random.PRNGKey(1))
    x2 = jax.random.normal(k1, (64, 512), dtype=jnp.float32)
    y2 = jax.random.normal(k2, (64, 512), dtype=jnp.float32)
    out2 = jax.block_until_ready(similarity(x2, y2, temp, block_b=32, block_d=256))
    assert jnp.allclose(out2, similarity_ref(x2, y2, temp), atol=1e-5, rtol=1e-5)

    # bf16 inputs: dtype-aware sublane tiling (16) + f32-first products.
    k3, k4 = jax.random.split(jax.random.PRNGKey(2))
    x3 = jax.random.normal(k3, (32, 384), dtype=jnp.bfloat16)
    y3 = jax.random.normal(k4, (32, 384), dtype=jnp.bfloat16)
    out3 = jax.block_until_ready(similarity(x3, y3, temp))
    assert jnp.allclose(out3, similarity_ref(x3, y3, temp), atol=1e-4, rtol=1e-4)

    # Awkward (unaligned) shapes exercise the zero-padding fallback.
    k5, k6 = jax.random.split(jax.random.PRNGKey(3))
    x4 = jax.random.normal(k5, (10, 200), dtype=jnp.float32)
    y4 = jax.random.normal(k6, (10, 200), dtype=jnp.float32)
    out4 = jax.block_until_ready(similarity(x4, y4, temp))
    assert out4.shape == (10,)
    assert jnp.allclose(out4, similarity_ref(x4, y4, temp), atol=1e-5, rtol=1e-5)

    print("KERNEL_OK")
</pallas_src>

<mosaic_0001>
module attributes {stable_mosaic.version = 11 : i64} {
  func.func @_similarity_kernel(%arg0: i32, %arg1: i32, %arg2: memref<8x32xf32, #tpu.memory_space<vmem>>, %arg3: memref<8x32xf32, #tpu.memory_space<vmem>>, %arg4: memref<8x1xf32, #tpu.memory_space<vmem>>, %arg5: memref<8x32xf32, #tpu.memory_space<vmem>>, %arg6: memref<8x32xf32, #tpu.memory_space<vmem>>, %arg7: memref<8x32xf32, #tpu.memory_space<vmem>>) attributes {dimension_semantics = [#tpu.dimension_semantics<parallel>, #tpu.dimension_semantics<arbitrary>], iteration_bounds = array<i64: 1, 1>, scalar_prefetch = 0 : i64, scratch_operands = 3 : i64, tpu.core_type = #tpu.core_type<tc>, window_params = [{transform_indices = @transform_0, window_bounds = array<i64: 8, 32>}, {transform_indices = @transform_1, window_bounds = array<i64: 8, 32>}, {transform_indices = @transform_2, window_bounds = array<i64: 8, 1>}]} {
    %c0_i32 = arith.constant 0 : i32
    %0 = arith.cmpi eq, %arg1, %c0_i32 : i32
    %1 = arith.extui %0 : i1 to i32
    %c0_i32_0 = arith.constant 0 : i32
    %2 = arith.cmpi ne, %1, %c0_i32_0 : i32
    scf.if %2 {
      %cst = arith.constant 0.000000e+00 : f32
      %20 = vector.broadcast %cst : f32 to vector<8x32xf32>
      %c0_18 = arith.constant 0 : index
      %c0_19 = arith.constant 0 : index
      %21 = vector.load %arg5[%c0_18, %c0_19] : memref<8x32xf32, #tpu.memory_space<vmem>>, vector<8x32xf32>
      tpu.vector_store %arg5[%c0_18, %c0_19], %20 {strides = array<i32>} : memref<8x32xf32, #tpu.memory_space<vmem>>, vector<8x32xf32>,
      %cst_20 = arith.constant 0.000000e+00 : f32
      %22 = vector.broadcast %cst_20 : f32 to vector<8x32xf32>
      %c0_21 = arith.constant 0 : index
      %c0_22 = arith.constant 0 : index
      %23 = vector.load %arg6[%c0_21, %c0_22] : memref<8x32xf32, #tpu.memory_space<vmem>>, vector<8x32xf32>
      tpu.vector_store %arg6[%c0_21, %c0_22], %22 {strides = array<i32>} : memref<8x32xf32, #tpu.memory_space<vmem>>, vector<8x32xf32>,
      %cst_23 = arith.constant 0.000000e+00 : f32
      %24 = vector.broadcast %cst_23 : f32 to vector<8x32xf32>
      %c0_24 = arith.constant 0 : index
      %c0_25 = arith.constant 0 : index
      %25 = vector.load %arg7[%c0_24, %c0_25] : memref<8x32xf32, #tpu.memory_space<vmem>>, vector<8x32xf32>
      tpu.vector_store %arg7[%c0_24, %c0_25], %24 {strides = array<i32>} : memref<8x32xf32, #tpu.memory_space<vmem>>, vector<8x32xf32>,
    } else {
    }
    %c0 = arith.constant 0 : index
    %c0_1 = arith.constant 0 : index
    %3 = vector.load %arg2[%c0, %c0_1] : memref<8x32xf32, #tpu.memory_space<vmem>>, vector<8x32xf32>
    %c0_2 = arith.constant 0 : index
    %c0_3 = arith.constant 0 : index
    %4 = vector.load %arg3[%c0_2, %c0_3] : memref<8x32xf32, #tpu.memory_space<vmem>>, vector<8x32xf32>
    %c0_4 = arith.constant 0 : index
    %c0_5 = arith.constant 0 : index
    %5 = vector.load %arg6[%c0_4, %c0_5] : memref<8x32xf32, #tpu.memory_space<vmem>>, vector<8x32xf32>
    %6 = arith.mulf %3, %3 : vector<8x32xf32>
    %7 = arith.addf %5, %6 : vector<8x32xf32>
    %c0_6 = arith.constant 0 : index
    %c0_7 = arith.constant 0 : index
    %8 = vector.load %arg6[%c0_6, %c0_7] : memref<8x32xf32, #tpu.memory_space<vmem>>, vector<8x32xf32>
    tpu.vector_store %arg6[%c0_6, %c0_7], %7 {strides = array<i32>} : memref<8x32xf32, #tpu.memory_space<vmem>>, vector<8x32xf32>,
    %c0_8 = arith.constant 0 : index
    %c0_9 = arith.constant 0 : index
    %9 = vector.load %arg7[%c0_8, %c0_9] : memref<8x32xf32, #tpu.memory_space<vmem>>, vector<8x32xf32>
    %10 = arith.mulf %4, %4 : vector<8x32xf32>
    %11 = arith.addf %9, %10 : vector<8x32xf32>
    %c0_10 = arith.constant 0 : index
    %c0_11 = arith.constant 0 : index
    %12 = vector.load %arg7[%c0_10, %c0_11] : memref<8x32xf32, #tpu.memory_space<vmem>>, vector<8x32xf32>
    tpu.vector_store %arg7[%c0_10, %c0_11], %11 {strides = array<i32>} : memref<8x32xf32, #tpu.memory_space<vmem>>, vector<8x32xf32>,
    %c0_12 = arith.constant 0 : index
    %c0_13 = arith.constant 0 : index
    %13 = vector.load %arg5[%c0_12, %c0_13] : memref<8x32xf32, #tpu.memory_space<vmem>>, vector<8x32xf32>
    %14 = arith.mulf %3, %4 : vector<8x32xf32>
    %15 = arith.addf %13, %14 : vector<8x32xf32>
    %c0_14 = arith.constant 0 : index
    %c0_15 = arith.constant 0 : index
    %16 = vector.load %arg5[%c0_14, %c0_15] : memref<8x32xf32, #tpu.memory_space<vmem>>, vector<8x32xf32>
    tpu.vector_store %arg5[%c0_14, %c0_15], %15 {strides = array<i32>} : memref<8x32xf32, #tpu.memory_space<vmem>>, vector<8x32xf32>,
    %c0_i32_16 = arith.constant 0 : i32
    %17 = arith.cmpi eq, %arg1, %c0_i32_16 : i32
    %18 = arith.extui %17 : i1 to i32
    %c0_i32_17 = arith.constant 0 : i32
    %19 = arith.cmpi ne, %18, %c0_i32_17 : i32
    scf.if %19 {
      %c0_18 = arith.constant 0 : index
      %c0_19 = arith.constant 0 : index
      %20 = vector.load %arg5[%c0_18, %c0_19] : memref<8x32xf32, #tpu.memory_space<vmem>>, vector<8x32xf32>
      %cst = arith.constant dense<0.000000e+00> : vector<8xf32>
      %21 = vector.multi_reduction <add>, %20, %cst [1] : vector<8x32xf32> to vector<8xf32>
      %22 = vector.shape_cast %21 : vector<8xf32> to vector<8x1xf32>
      %c0_20 = arith.constant 0 : index
      %c0_21 = arith.constant 0 : index
      %23 = vector.load %arg6[%c0_20, %c0_21] : memref<8x32xf32, #tpu.memory_space<vmem>>, vector<8x32xf32>
      %cst_22 = arith.constant dense<0.000000e+00> : vector<8xf32>
      %24 = vector.multi_reduction <add>, %23, %cst_22 [1] : vector<8x32xf32> to vector<8xf32>
      %25 = vector.shape_cast %24 : vector<8xf32> to vector<8x1xf32>
      %c0_23 = arith.constant 0 : index
      %c0_24 = arith.constant 0 : index
      %26 = vector.load %arg7[%c0_23, %c0_24] : memref<8x32xf32, #tpu.memory_space<vmem>>, vector<8x32xf32>
      %cst_25 = arith.constant dense<0.000000e+00> : vector<8xf32>
      %27 = vector.multi_reduction <add>, %26, %cst_25 [1] : vector<8x32xf32> to vector<8xf32>
      %28 = vector.shape_cast %27 : vector<8xf32> to vector<8x1xf32>
      %29 = arith.mulf %25, %28 : vector<8x1xf32>
      %cst_26 = arith.constant 1.000000e-16 : f32
      %30 = vector.broadcast %cst_26 : f32 to vector<8x1xf32>
      %31 = arith.maximumf %29, %30 : vector<8x1xf32>
      %32 = math.rsqrt %31 : vector<8x1xf32>
      %33 = arith.mulf %22, %32 : vector<8x1xf32>
      %cst_27 = arith.constant 2.000000e+01 : f32
      %34 = vector.broadcast %cst_27 : f32 to vector<8x1xf32>
      %35 = arith.mulf %33, %34 : vector<8x1xf32>
      %c0_28 = arith.constant 0 : index
      %c0_29 = arith.constant 0 : index
      %36 = vector.load %arg4[%c0_28, %c0_29] : memref<8x1xf32, #tpu.memory_space<vmem>>, vector<8x1xf32>
      tpu.vector_store %arg4[%c0_28, %c0_29], %35 {strides = array<i32>} : memref<8x1xf32, #tpu.memory_space<vmem>>, vector<8x1xf32>,
    } else {
    }
    return
  }
  func.func @transform_0(%arg0: i32, %arg1: i32) -> (i32, i32) {
    %c0_i32 = arith.constant 0 : i32
    return %arg0, %arg1 : i32, i32
  }
  func.func @transform_1(%arg0: i32, %arg1: i32) -> (i32, i32) {
    %c0_i32 = arith.constant 0 : i32
    return %arg0, %arg1 : i32, i32
  }
  func.func @transform_2(%arg0: i32, %arg1: i32) -> (i32, i32) {
    %c0_i32 = arith.constant 0 : i32
    %c0_i32_0 = arith.constant 0 : i32
    return %arg0, %c0_i32 : i32, i32
  }
}

</mosaic_0001>

<llo_original>
// kernel: tpu_custom_call.1
$region0: #{tpu_custom_call.1}
  #allocation0 [shape = 'u32[]', space=smem, size = 0x4, offset = 0x4, fixed_abs, tag = 'smem constant byte address 0x4 - core index']
  #allocation1 [shape = 'u32[144,128]{1,0:T(1,128)}', space=vmem, size = 0x12000, scoped, tag = 'internal scratch']
  #allocation2 [shape = 'f32[8,32]{1,0:T(8,128)}', space=vmem, size = 0x1000, scoped, tag = 'scratch operand']
  #allocation3 [shape = 'f32[8,32]{1,0:T(8,128)}', space=vmem, size = 0x1000, scoped, tag = 'scratch operand']
  #allocation4 [shape = 'f32[8,32]{1,0:T(8,128)}', space=vmem, size = 0x1000, scoped, tag = 'scratch operand']
  %s0 = inlined_call_operand.hbm [shape: f32[8,32], index: 0, kind: input, shape index: {}]
  %s1 = inlined_call_operand.hbm [shape: f32[8,32], index: 1, kind: input, shape index: {}]
  %s2 = inlined_call_operand.vmem [shape: f32[8,1], index: 2, kind: output, shape index: {}]
  %s3 = sld [smem:[#allocation0]]
  $region34: #{tpu_custom_call.1} parent=0
    _
  %s5 = ssub.s32 1, %s3
  %s6 = scalar_select 0, %s5, %s3
  $region1: #{tpu_custom_call.1} parent=0
    #allocation5 [shape = 'u8[4096]{0}', space=vmem, size = 0x1000, scoped, tag = 'input window, operand 0, single buffered']
    #allocation6 [shape = 's32[1]{0}', space=sflag, size = 0x4, scoped, tag = 'scoped memory for tpu_custom_call.1']
    #allocation7 [shape = 'u8[4096]{0}', space=vmem, size = 0x1000, scoped, tag = 'input window, operand 1, single buffered']
    #allocation8 [shape = 's32[1]{0}', space=sflag, size = 0x4, scoped, tag = 'scoped memory for tpu_custom_call.1']
    %7 = vsyncpa [#allocation6], 0
    %8 = vsyncpa [#allocation8], 0
    // Predicated region
    $region2: #{tpu_custom_call.1} parent=1 // pred_check
      _
    $region3: #{tpu_custom_call.1} parent=1 // pred_check_branch
      %10 = sbr.rel (0) target = $region5
    $region4: #{tpu_custom_call.1} parent=1 // pred_region
      %s12 = ssub.s32 128, 128
      %13 = vsyncadd [#allocation6], %s12
      %s15 = sshll.u32 [#allocation5], 4
      %s16 = int_to_ptr.vmem [resolvable:$true] %s15
      %18 = dma.hbm_to_vmem [thread:$0]  %s0, 128, %s16, [#allocation6]
    $region5: #{tpu_custom_call.1} parent=1 // pred_fallthru
      _
    // Predicated region
    $region6: #{tpu_custom_call.1} parent=1 // pred_check
      _
    $region7: #{tpu_custom_call.1} parent=1 // pred_check_branch
      %20 = sbr.rel (0) target = $region9
    $region8: #{tpu_custom_call.1} parent=1 // pred_region
      %s22 = ssub.s32 128, 128
      %23 = vsyncadd [#allocation8], %s22
      %s25 = sshll.u32 [#allocation7], 4
      %s26 = int_to_ptr.vmem [resolvable:$true] %s25
      %28 = dma.hbm_to_vmem [thread:$0]  %s1, 128, %s26, [#allocation8]
    $region9: #{tpu_custom_call.1} parent=1 // pred_fallthru
      _
    // Predicated region
    $region10: #{tpu_custom_call.1} parent=1 // pred_check
      _
    $region11: #{tpu_custom_call.1} parent=1 // pred_check_branch
      %30 = sbr.rel (0) target = $region13
    $region12: #{tpu_custom_call.1} parent=1 // pred_region
      %31 = dma.done [#allocation6], 128
    $region13: #{tpu_custom_call.1} parent=1 // pred_fallthru
      _
    // Predicated region
    $region14: #{tpu_custom_call.1} parent=1 // pred_check
      _
    $region15: #{tpu_custom_call.1} parent=1 // pred_check_branch
      %33 = sbr.rel (0) target = $region17
    $region16: #{tpu_custom_call.1} parent=1 // pred_region
      %34 = dma.done [#allocation8], 128
    $region17: #{tpu_custom_call.1} parent=1 // pred_fallthru
      _
    %p35 = scmp.eq.s32.totalorder 0, 0
    // Predicated region
    $region18: #{tpu_custom_call.1} parent=1 // pred_check
      %p36 = pneg %p35
    $region19: #{tpu_custom_call.1} parent=1 // pred_check_branch
      %38 = sbr.rel (%p36) target = $region21
    $region20: #{tpu_custom_call.1} parent=1 // pred_region
      %vm39 = vcmask 261120
      %40 = vst.msk [vmem:[#allocation2] sm:$0xff] %vm39, 0.0
      %41 = vst.msk [vmem:[#allocation3] sm:$0xff] %vm39, 0.0
      %42 = vst.msk [vmem:[#allocation4] sm:$0xff] %vm39, 0.0
    $region21: #{tpu_custom_call.1} parent=1 // pred_fallthru
      _
    %v43 = vld [vmem:[#allocation5] sm:$0xff]
    %v44 = vld [vmem:[#allocation7] sm:$0xff]
    %v45 = vld [vmem:[#allocation3] sm:$0xff]
    %v46 = vmul.f32 %v43, %v43
    %v47 = vadd.f32 %v45, %v46
    %vm48 = vcmask 261120
    %49 = vst.msk [vmem:[#allocation3] sm:$0xff] %vm48, %v47
    %v50 = vld [vmem:[#allocation4] sm:$0xff]
    %v51 = vmul.f32 %v44, %v44
    %v52 = vadd.f32 %v50, %v51
    %53 = vst.msk [vmem:[#allocation4] sm:$0xff] %vm48, %v52
    %v54 = vld [vmem:[#allocation2] sm:$0xff]
    %v55 = vmul.f32 %v43, %v44
    %v56 = vadd.f32 %v54, %v55
    %57 = vst.msk [vmem:[#allocation2] sm:$0xff] %vm48, %v56
    // Predicated region
    $region22: #{tpu_custom_call.1} parent=1 // pred_check
      %p58 = pneg %p35
    $region23: #{tpu_custom_call.1} parent=1 // pred_check_branch
      %60 = sbr.rel (%p58) target = $region25
    $region24: #{tpu_custom_call.1} parent=1 // pred_region
      %v61 = vld [vmem:[#allocation2] sm:$0xff]
      %v62 = vsel %vm48, %v61, 0.0
      %63 = vadd.xlane.f32.xlu0 %v62
      %v64 = vpop.xlane.xlu0 %63
      %v65 = vld [vmem:[#allocation3] sm:$0xff]
      %v66 = vsel %vm48, %v65, 0.0
      %67 = vadd.xlane.f32.xlu0 %v66
      %v68 = vpop.xlane.xlu0 %67
      %v69 = vld [vmem:[#allocation4] sm:$0xff]
      %v70 = vsel %vm48, %v69, 0.0
      %71 = vadd.xlane.f32.xlu0 %v70
      %v72 = vpop.xlane.xlu0 %71
      %v73 = vmul.f32 %v68, %v72
      %v74 = vmax.f32 %v73, 1e-16
      %v75 = vrsqrt.pop %v74
      %v76 = vmul.f32 %v64, %v75
      %v77 = vmul.f32 %v76, 20.0
      %vm78 = vcmask 7168
      %79 = vst.msk [vmem:[%s2] sm:$0xff] %vm78, %v77
    $region25: #{tpu_custom_call.1} parent=1 // pred_fallthru
      _
    // Predicated region
    $region26: #{tpu_custom_call.1} parent=1 // pred_check
      _
    $region27: #{tpu_custom_call.1} parent=1 // pred_check_branch
      %81 = sbr.rel (0) target = $region29
    $region28: #{tpu_custom_call.1} parent=1 // pred_region
      _
    $region29: #{tpu_custom_call.1} parent=1 // pred_fallthru
      _
    // Predicated region
    $region30: #{tpu_custom_call.1} parent=1 // pred_check
      _
    $region31: #{tpu_custom_call.1} parent=1 // pred_check_branch
      %83 = sbr.rel (0) target = $region33
    $region32: #{tpu_custom_call.1} parent=1 // pred_region
      _
    $region33: #{tpu_custom_call.1} parent=1 // pred_fallthru
      _
    %84 = vsyncpa [#allocation6], 1
    %85 = vsyncpa [#allocation8], 1

</llo_original>
